<compile_context>
chip_gen: v6e
topology: v6e:2x2x1
jax: 0.10.0
libtpu: 0.0.40
codegen_flags: <defaults>
</compile_context>

<pallas_src>
import jax
import jax.numpy as jnp
import numpy as np
from jax.experimental import pallas as pl
from jax.experimental.pallas import tpu as pltpu


def seq_disc_kernel(seq_ref, x_ref, wts_ref, rows_ref, out_ref):
    f32 = jnp.float32
    BL = x_ref.shape[0]
    B = seq_ref.shape[0]
    L = BL // B
    H = wts_ref.shape[1]

    # (B*L, 1) boundary masks: row has a valid left/right neighbour within its own sequence.
    pos = jax.lax.broadcasted_iota(jnp.int32, (BL, 1), 0) % L
    prev_ok = pos != 0
    next_ok = pos != (L - 1)

    def shift_prev(h):  # out[l] = h[l-1] within a sequence, 0 where the tap reads conv padding
        return jnp.where(prev_ok, pltpu.roll(h, shift=1, axis=0), 0.0)

    def shift_next(h):  # out[l] = h[l+1] within a sequence, 0 where the tap reads conv padding
        return jnp.where(next_ok, pltpu.roll(h, shift=BL - 1, axis=0), 0.0)

    # small packed rows: [w1_tap0, w1_tap1, w1_tap2, b1, fc_row(folded), fc_bias(folded), 0, 0]
    small = rows_ref[0:8, :]                       # one aligned (8, H) load
    w1_0 = small[0:1, :]
    w1_1 = small[1:2, :]
    w1_2 = small[2:3, :]
    b1 = small[3:4, :]
    fw = small[4:5, :]
    fb = small[5:6, 0:1]                           # (1, 1) folded fc bias (fb + t3 @ fc_w)

    # ---- layer 1 (Cin = 1): VPU broadcast multiplies, no MXU --------------------------------
    x = x_ref[...]                                 # (B*L, 1)
    o1 = shift_prev(x * w1_0) + x * w1_1 + shift_next(x * w1_2) + b1
    h = jnp.maximum(o1, 0.0)                       # eval-BN (s1, t1) folded into layer 2

    # ---- layers 2 & 3: three K=H MXU pushes into one f32 accumulator per layer --------------
    def conv_layer(h, w_off, bias):
        w_p = wts_ref[w_off:w_off + H, :]          # prev-tap weights (already BN-scaled)
        w_c = wts_ref[w_off + H:w_off + 2 * H, :]
        w_n = wts_ref[w_off + 2 * H:w_off + 3 * H, :]
        o = (jnp.dot(shift_prev(h), w_p, preferred_element_type=f32)
             + jnp.dot(h, w_c, preferred_element_type=f32)
             + jnp.dot(shift_next(h), w_n, preferred_element_type=f32)
             + bias)
        return jnp.maximum(o, 0.0)

    bias2 = rows_ref[8:8 + BL, :]                  # per-position folded bias (B*L, H)
    bias3 = rows_ref[8 + BL:8 + 2 * BL, :]
    h = conv_layer(h, 0, bias2)                    # eval-BN (s2, t2) folded into layer 3
    h = conv_layer(h, 3 * H, bias3)                # eval-BN (s3, t3) folded into the FC below

    # ---- FC folded into masked global average pooling (VPU mul + reductions) ----------------
    row_logits = jnp.sum(h * fw, axis=1, keepdims=True)        # (B*L, 1)
    pos_L = jax.lax.broadcasted_iota(jnp.int32, (L, 1), 0)
    results = []
    for b in range(B):                             # tiny static loop: scalar/VPU only
        n = seq_ref[b]                             # int32 scalar from SMEM
        seg = row_logits[b * L:(b + 1) * L, :]     # (L, 1) static slice
        pooled = jnp.sum(jnp.where(pos_L < n, seg, 0.0), axis=0, keepdims=True)
        denom = jnp.maximum(n, 1).astype(f32)      # deliberate guard for seq_len == 0
        results.append(pooled / denom + fb)
    out_ref[...] = jnp.concatenate(results, axis=1).astype(out_ref.dtype)   # lane-major (1, B)


def seq_discriminator(x, seq_lens, params):
    """x: (B, L) float32, seq_lens: (B,) int32  ->  (B, 1) float32."""
    (w1, b1, s1, t1, w2, b2, s2, t2, w3, b3, s3, t3, fw, fb) = params
    B, L = x.shape
    H = w1.shape[-1]
    BL = B * L
    assert H % 8 == 0 and BL % 8 == 0 and L >= 2

    # ---- one-time eval-BN folds (weight precompute, NOT input pre-scaling) ------------------
    # scale folds (exact): s1 -> conv2 input rows, s2 -> conv3 input rows, s3 -> fc weight
    w2s = (w2 * s1.reshape(1, H, 1)).reshape(3 * H, H)
    w3s = (w3 * s2.reshape(1, H, 1)).reshape(3 * H, H)
    fws = (fw.reshape(H) * s3.reshape(H)).reshape(1, H)
    fbs = fb.reshape(()) + jnp.dot(t3.reshape(H), fw.reshape(H))

    # shift folds: t contributes (t @ W_k) per tap EXCEPT where that tap reads conv
    # zero-padding, so the folded bias is position dependent at the boundary rows.
    def folded_bias(bias, t_prev, w_orig):
        tw = jnp.einsum('h,khj->kj', t_prev.reshape(H), w_orig)   # (3, H): t @ W_k per tap
        l = jnp.arange(L)[:, None]
        pb = (bias.reshape(1, H) + tw[1]
              + jnp.where(l > 0, tw[0], 0.0)
              + jnp.where(l < L - 1, tw[2], 0.0))                 # (L, H)
        return jnp.tile(pb, (B, 1))                               # (B*L, H)

    bias2 = folded_bias(b2, t1, w2)
    bias3 = folded_bias(b3, t2, w3)

    # ---- pack parameters: 2 VMEM arrays + 1 SMEM array (was 15 VMEM + 1 SMEM) ---------------
    wts = jnp.concatenate([w2s, w3s], axis=0)                     # (6H, H), taps 8-aligned
    small = jnp.concatenate(
        [w1.reshape(3, H), b1.reshape(1, H), fws,
         jnp.broadcast_to(fbs, (1, H)).astype(jnp.float32),
         jnp.zeros((2, H), jnp.float32)], axis=0)                 # (8, H)
    rows = jnp.concatenate([small, bias2, bias3], axis=0)         # (8 + 2*B*L, H)

    x_flat = x.reshape(BL, 1)                                     # batch fused along sublanes
    vm = pl.BlockSpec(memory_space=pltpu.MemorySpace.VMEM)
    sm = pl.BlockSpec(memory_space=pltpu.MemorySpace.SMEM)
    out = pl.pallas_call(
        seq_disc_kernel,
        out_shape=jax.ShapeDtypeStruct((1, B), jnp.float32),
        in_specs=[sm, vm, vm, vm],
        out_specs=vm,
    )(seq_lens, x_flat, wts, rows)
    return out.reshape(B, 1)


def make_params(key, hidden_dim=32, num_conv_layers=3, kernel_size=3, bn_eps=1e-5):
    """Deterministic synthetic parameters (no checkpoint).  Conv weights laid out (K, Cin, H).
    BN running stats are randomized (not the identity defaults) so the BN-fold path is tested."""
    params = []
    in_ch = 1
    for _ in range(num_conv_layers):
        key, kw, kb, kg, kbe, km, kv = jax.random.split(key, 7)
        w = 0.1 * jax.random.normal(kw, (kernel_size, in_ch, hidden_dim), jnp.float32)
        b = 0.1 * jax.random.normal(kb, (1, hidden_dim), jnp.float32)
        gamma = 1.0 + 0.1 * jax.random.normal(kg, (1, hidden_dim), jnp.float32)
        beta = 0.1 * jax.random.normal(kbe, (1, hidden_dim), jnp.float32)
        r_mean = 0.1 * jax.random.normal(km, (1, hidden_dim), jnp.float32)
        r_var = 1.0 + 0.1 * jnp.abs(jax.random.normal(kv, (1, hidden_dim), jnp.float32))
        scale = gamma / jnp.sqrt(r_var + bn_eps)          # eval-mode BN as per-channel affine
        shift = beta - r_mean * scale
        params += [w, b, scale, shift]
        in_ch = hidden_dim
    key, kw, kb = jax.random.split(key, 3)
    fcw = 0.1 * jax.random.normal(kw, (hidden_dim, 1), jnp.float32)
    fcb = 0.1 * jax.random.normal(kb, (1, 1), jnp.float32)
    params += [fcw, fcb]
    return params


def reference(x, seq_lens, params):
    """Pure-JAX reference of the same (eval-mode) forward pass."""
    (w1, b1, s1, t1, w2, b2, s2, t2, w3, b3, s3, t3, fw, fb) = params
    B, L = x.shape
    h = x[:, :, None]
    for (w, b, s, t) in ((w1, b1, s1, t1), (w2, b2, s2, t2), (w3, b3, s3, t3)):
        hp = jnp.pad(h, ((0, 0), (1, 1), (0, 0)))
        o = (jnp.einsum('blc,ch->blh', hp[:, 0:L], w[0])
             + jnp.einsum('blc,ch->blh', hp[:, 1:L + 1], w[1])
             + jnp.einsum('blc,ch->blh', hp[:, 2:L + 2], w[2]) + b)
        h = jnp.maximum(o, 0.0) * s + t
    mask = jnp.arange(L)[None, :, None] < seq_lens[:, None, None]
    pooled = jnp.sum(jnp.where(mask, h, 0.0), axis=1) / seq_lens[:, None].astype(jnp.float32)
    return pooled @ fw + fb


if __name__ == "__main__":
    B, L, H = 2, 16, 32
    key = jax.random.PRNGKey(0)
    key, kx = jax.random.split(key)
    x = jax.random.normal(kx, (B, L), jnp.float32)         # durations (real or fake)
    seq_lens = jnp.array([16, 9], dtype=jnp.int32)
    params = make_params(key, hidden_dim=H)

    out = jax.block_until_ready(seq_discriminator(x, seq_lens, params))
    assert out.shape == (B, 1)

    ref = jax.block_until_ready(reference(x, seq_lens, params))
    np.testing.assert_allclose(np.asarray(out), np.asarray(ref), rtol=2e-4, atol=2e-5)

    print("KERNEL_OK")
</pallas_src>

<mosaic_0001>
module attributes {stable_mosaic.version = 11 : i64} {
  func.func @seq_disc_kernel(%arg0: memref<2xi32, #tpu.memory_space<smem>>, %arg1: memref<32x1xf32, #tpu.memory_space<vmem>>, %arg2: memref<192x32xf32, #tpu.memory_space<vmem>>, %arg3: memref<72x32xf32, #tpu.memory_space<vmem>>, %arg4: memref<1x2xf32, #tpu.memory_space<vmem>>) attributes {dimension_semantics = [], scalar_prefetch = 0 : i64, scratch_operands = 0 : i64, tpu.core_type = #tpu.core_type<tc>} {
    %0 = tpu.iota {dimensions = array<i32: 0>} : vector<32x1xi32>
    %c16_i32 = arith.constant 16 : i32
    %c0_i32 = arith.constant 0 : i32
    %1 = arith.cmpi eq, %c16_i32, %c0_i32 : i32
    %c1_i32 = arith.constant 1 : i32
    %2 = arith.select %1, %c1_i32, %c16_i32 : i32
    %3 = vector.broadcast %2 : i32 to vector<32x1xi32>
    %4 = arith.remsi %0, %3 : vector<32x1xi32>
    %c0_i32_0 = arith.constant 0 : i32
    %5 = vector.broadcast %c0_i32_0 : i32 to vector<32x1xi32>
    %6 = arith.cmpi ne, %4, %5 : vector<32x1xi32>
    %c0_i32_1 = arith.constant 0 : i32
    %7 = vector.broadcast %c0_i32_1 : i32 to vector<32x1xi32>
    %8 = arith.cmpi slt, %4, %7 : vector<32x1xi32>
    %c0_i32_2 = arith.constant 0 : i32
    %9 = arith.cmpi slt, %2, %c0_i32_2 : i32
    %10 = vector.broadcast %9 : i1 to vector<32x1xi1>
    %11 = vector.broadcast %10 : vector<32x1xi1> to vector<32x1xi1>
    %12 = arith.xori %8, %11 : vector<32x1xi1>
    %13 = arith.andi %12, %6 : vector<32x1xi1>
    %14 = vector.broadcast %2 : i32 to vector<32x1xi32>
    %15 = arith.addi %4, %14 : vector<32x1xi32>
    %16 = arith.select %13, %15, %4 : vector<32x1xi1>, vector<32x1xi32>
    %c0_i32_3 = arith.constant 0 : i32
    %17 = vector.broadcast %c0_i32_3 : i32 to vector<32x1xi32>
    %18 = arith.cmpi ne, %16, %17 : vector<32x1xi32>
    %c15_i32 = arith.constant 15 : i32
    %19 = vector.broadcast %c15_i32 : i32 to vector<32x1xi32>
    %20 = arith.cmpi ne, %16, %19 : vector<32x1xi32>
    %c0 = arith.constant 0 : index
    %c0_4 = arith.constant 0 : index
    %21 = vector.load %arg3[%c0, %c0_4] : memref<72x32xf32, #tpu.memory_space<vmem>>, vector<8x32xf32>
    %22 = vector.extract_strided_slice %21 {offsets = [0, 0], sizes = [1, 32], strides = [1, 1]} : vector<8x32xf32> to vector<1x32xf32>
    %23 = vector.extract_strided_slice %21 {offsets = [1, 0], sizes = [1, 32], strides = [1, 1]} : vector<8x32xf32> to vector<1x32xf32>
    %24 = vector.extract_strided_slice %21 {offsets = [2, 0], sizes = [1, 32], strides = [1, 1]} : vector<8x32xf32> to vector<1x32xf32>
    %25 = vector.extract_strided_slice %21 {offsets = [3, 0], sizes = [1, 32], strides = [1, 1]} : vector<8x32xf32> to vector<1x32xf32>
    %26 = vector.extract_strided_slice %21 {offsets = [4, 0], sizes = [1, 32], strides = [1, 1]} : vector<8x32xf32> to vector<1x32xf32>
    %27 = vector.extract_strided_slice %21 {offsets = [5, 0], sizes = [1, 1], strides = [1, 1]} : vector<8x32xf32> to vector<1x1xf32>
    %c0_5 = arith.constant 0 : index
    %c0_6 = arith.constant 0 : index
    %28 = vector.load %arg1[%c0_5, %c0_6] : memref<32x1xf32, #tpu.memory_space<vmem>>, vector<32x1xf32>
    %29 = vector.broadcast %28 : vector<32x1xf32> to vector<32x32xf32>
    %30 = vector.broadcast %22 : vector<1x32xf32> to vector<32x32xf32>
    %31 = arith.mulf %29, %30 : vector<32x32xf32>
    %c1_i32_7 = arith.constant 1 : i32
    %32 = tpu.dynamic_rotate %31 by %c1_i32_7 dim 0 : vector<32x32xf32>, i32 -> vector<32x32xf32>
    %cst = arith.constant 0.000000e+00 : f32
    %33 = vector.shape_cast %18 : vector<32x1xi1> to vector<32x1xi1>
    %34 = vector.broadcast %33 : vector<32x1xi1> to vector<32x32xi1>
    %35 = vector.broadcast %cst : f32 to vector<32x32xf32>
    %36 = arith.select %34, %32, %35 : vector<32x32xi1>, vector<32x32xf32>
    %37 = vector.broadcast %28 : vector<32x1xf32> to vector<32x32xf32>
    %38 = vector.broadcast %23 : vector<1x32xf32> to vector<32x32xf32>
    %39 = arith.mulf %37, %38 : vector<32x32xf32>
    %40 = arith.addf %36, %39 : vector<32x32xf32>
    %41 = vector.broadcast %28 : vector<32x1xf32> to vector<32x32xf32>
    %42 = vector.broadcast %24 : vector<1x32xf32> to vector<32x32xf32>
    %43 = arith.mulf %41, %42 : vector<32x32xf32>
    %c31_i32 = arith.constant 31 : i32
    %44 = tpu.dynamic_rotate %43 by %c31_i32 dim 0 : vector<32x32xf32>, i32 -> vector<32x32xf32>
    %cst_8 = arith.constant 0.000000e+00 : f32
    %45 = vector.shape_cast %20 : vector<32x1xi1> to vector<32x1xi1>
    %46 = vector.broadcast %45 : vector<32x1xi1> to vector<32x32xi1>
    %47 = vector.broadcast %cst_8 : f32 to vector<32x32xf32>
    %48 = arith.select %46, %44, %47 : vector<32x32xi1>, vector<32x32xf32>
    %49 = arith.addf %40, %48 : vector<32x32xf32>
    %50 = vector.broadcast %25 : vector<1x32xf32> to vector<32x32xf32>
    %51 = arith.addf %49, %50 : vector<32x32xf32>
    %cst_9 = arith.constant 0.000000e+00 : f32
    %52 = vector.broadcast %cst_9 : f32 to vector<32x32xf32>
    %53 = arith.maximumf %51, %52 : vector<32x32xf32>
    %c8 = arith.constant 8 : index
    %c0_10 = arith.constant 0 : index
    %54 = vector.load %arg3[%c8, %c0_10] : memref<72x32xf32, #tpu.memory_space<vmem>>, vector<32x32xf32>
    %c40 = arith.constant 40 : index
    %c0_11 = arith.constant 0 : index
    %55 = vector.load %arg3[%c40, %c0_11] : memref<72x32xf32, #tpu.memory_space<vmem>>, vector<32x32xf32>
    %c0_12 = arith.constant 0 : index
    %c0_13 = arith.constant 0 : index
    %56 = vector.load %arg2[%c0_12, %c0_13] : memref<192x32xf32, #tpu.memory_space<vmem>>, vector<32x32xf32>
    %c32 = arith.constant 32 : index
    %c0_14 = arith.constant 0 : index
    %57 = vector.load %arg2[%c32, %c0_14] : memref<192x32xf32, #tpu.memory_space<vmem>>, vector<32x32xf32>
    %c64 = arith.constant 64 : index
    %c0_15 = arith.constant 0 : index
    %58 = vector.load %arg2[%c64, %c0_15] : memref<192x32xf32, #tpu.memory_space<vmem>>, vector<32x32xf32>
    %c1_i32_16 = arith.constant 1 : i32
    %59 = tpu.dynamic_rotate %53 by %c1_i32_16 dim 0 : vector<32x32xf32>, i32 -> vector<32x32xf32>
    %cst_17 = arith.constant 0.000000e+00 : f32
    %60 = vector.shape_cast %18 : vector<32x1xi1> to vector<32x1xi1>
    %61 = vector.broadcast %60 : vector<32x1xi1> to vector<32x32xi1>
    %62 = vector.broadcast %cst_17 : f32 to vector<32x32xf32>
    %63 = arith.select %61, %59, %62 : vector<32x32xi1>, vector<32x32xf32>
    %cst_18 = arith.constant dense<0.000000e+00> : vector<32x32xf32>
    %64 = tpu.matmul %63, %56, %cst_18 {dimension_numbers = #tpu.dot_dimension_numbers<[1], [0], [0], [1], [0, 0, 1, 1], [], []>} : vector<32x32xf32>, vector<32x32xf32>, vector<32x32xf32> -> vector<32x32xf32>
    %cst_19 = arith.constant dense<0.000000e+00> : vector<32x32xf32>
    %65 = tpu.matmul %53, %57, %cst_19 {dimension_numbers = #tpu.dot_dimension_numbers<[1], [0], [0], [1], [0, 0, 1, 1], [], []>} : vector<32x32xf32>, vector<32x32xf32>, vector<32x32xf32> -> vector<32x32xf32>
    %66 = arith.addf %64, %65 : vector<32x32xf32>
    %c31_i32_20 = arith.constant 31 : i32
    %67 = tpu.dynamic_rotate %53 by %c31_i32_20 dim 0 : vector<32x32xf32>, i32 -> vector<32x32xf32>
    %cst_21 = arith.constant 0.000000e+00 : f32
    %68 = vector.shape_cast %20 : vector<32x1xi1> to vector<32x1xi1>
    %69 = vector.broadcast %68 : vector<32x1xi1> to vector<32x32xi1>
    %70 = vector.broadcast %cst_21 : f32 to vector<32x32xf32>
    %71 = arith.select %69, %67, %70 : vector<32x32xi1>, vector<32x32xf32>
    %cst_22 = arith.constant dense<0.000000e+00> : vector<32x32xf32>
    %72 = tpu.matmul %71, %58, %cst_22 {dimension_numbers = #tpu.dot_dimension_numbers<[1], [0], [0], [1], [0, 0, 1, 1], [], []>} : vector<32x32xf32>, vector<32x32xf32>, vector<32x32xf32> -> vector<32x32xf32>
    %73 = arith.addf %66, %72 : vector<32x32xf32>
    %74 = arith.addf %73, %54 : vector<32x32xf32>
    %cst_23 = arith.constant 0.000000e+00 : f32
    %75 = vector.broadcast %cst_23 : f32 to vector<32x32xf32>
    %76 = arith.maximumf %74, %75 : vector<32x32xf32>
    %c96 = arith.constant 96 : index
    %c0_24 = arith.constant 0 : index
    %77 = vector.load %arg2[%c96, %c0_24] : memref<192x32xf32, #tpu.memory_space<vmem>>, vector<32x32xf32>
    %c128 = arith.constant 128 : index
    %c0_25 = arith.constant 0 : index
    %78 = vector.load %arg2[%c128, %c0_25] : memref<192x32xf32, #tpu.memory_space<vmem>>, vector<32x32xf32>
    %c160 = arith.constant 160 : index
    %c0_26 = arith.constant 0 : index
    %79 = vector.load %arg2[%c160, %c0_26] : memref<192x32xf32, #tpu.memory_space<vmem>>, vector<32x32xf32>
    %c1_i32_27 = arith.constant 1 : i32
    %80 = tpu.dynamic_rotate %76 by %c1_i32_27 dim 0 : vector<32x32xf32>, i32 -> vector<32x32xf32>
    %cst_28 = arith.constant 0.000000e+00 : f32
    %81 = vector.shape_cast %18 : vector<32x1xi1> to vector<32x1xi1>
    %82 = vector.broadcast %81 : vector<32x1xi1> to vector<32x32xi1>
    %83 = vector.broadcast %cst_28 : f32 to vector<32x32xf32>
    %84 = arith.select %82, %80, %83 : vector<32x32xi1>, vector<32x32xf32>
    %cst_29 = arith.constant dense<0.000000e+00> : vector<32x32xf32>
    %85 = tpu.matmul %84, %77, %cst_29 {dimension_numbers = #tpu.dot_dimension_numbers<[1], [0], [0], [1], [0, 0, 1, 1], [], []>} : vector<32x32xf32>, vector<32x32xf32>, vector<32x32xf32> -> vector<32x32xf32>
    %cst_30 = arith.constant dense<0.000000e+00> : vector<32x32xf32>
    %86 = tpu.matmul %76, %78, %cst_30 {dimension_numbers = #tpu.dot_dimension_numbers<[1], [0], [0], [1], [0, 0, 1, 1], [], []>} : vector<32x32xf32>, vector<32x32xf32>, vector<32x32xf32> -> vector<32x32xf32>
    %87 = arith.addf %85, %86 : vector<32x32xf32>
    %c31_i32_31 = arith.constant 31 : i32
    %88 = tpu.dynamic_rotate %76 by %c31_i32_31 dim 0 : vector<32x32xf32>, i32 -> vector<32x32xf32>
    %cst_32 = arith.constant 0.000000e+00 : f32
    %89 = vector.shape_cast %20 : vector<32x1xi1> to vector<32x1xi1>
    %90 = vector.broadcast %89 : vector<32x1xi1> to vector<32x32xi1>
    %91 = vector.broadcast %cst_32 : f32 to vector<32x32xf32>
    %92 = arith.select %90, %88, %91 : vector<32x32xi1>, vector<32x32xf32>
    %cst_33 = arith.constant dense<0.000000e+00> : vector<32x32xf32>
    %93 = tpu.matmul %92, %79, %cst_33 {dimension_numbers = #tpu.dot_dimension_numbers<[1], [0], [0], [1], [0, 0, 1, 1], [], []>} : vector<32x32xf32>, vector<32x32xf32>, vector<32x32xf32> -> vector<32x32xf32>
    %94 = arith.addf %87, %93 : vector<32x32xf32>
    %95 = arith.addf %94, %55 : vector<32x32xf32>
    %cst_34 = arith.constant 0.000000e+00 : f32
    %96 = vector.broadcast %cst_34 : f32 to vector<32x32xf32>
    %97 = arith.maximumf %95, %96 : vector<32x32xf32>
    %98 = vector.broadcast %26 : vector<1x32xf32> to vector<32x32xf32>
    %99 = arith.mulf %97, %98 : vector<32x32xf32>
    %cst_35 = arith.constant dense<0.000000e+00> : vector<32xf32>
    %100 = vector.multi_reduction <add>, %99, %cst_35 [1] : vector<32x32xf32> to vector<32xf32>
    %101 = vector.shape_cast %100 : vector<32xf32> to vector<32x1xf32>
    %102 = tpu.iota {dimensions = array<i32: 0>} : vector<16x1xi32>
    %c0_36 = arith.constant 0 : index
    %103 = memref.load %arg0[%c0_36] : memref<2xi32, #tpu.memory_space<smem>>
    %104 = vector.extract_strided_slice %101 {offsets = [0, 0], sizes = [16, 1], strides = [1, 1]} : vector<32x1xf32> to vector<16x1xf32>
    %105 = vector.broadcast %103 : i32 to vector<16x1xi32>
    %106 = arith.cmpi slt, %102, %105 : vector<16x1xi32>
    %cst_37 = arith.constant 0.000000e+00 : f32
    %107 = vector.broadcast %cst_37 : f32 to vector<16x1xf32>
    %108 = arith.select %106, %104, %107 : vector<16x1xi1>, vector<16x1xf32>
    %cst_38 = arith.constant dense<0.000000e+00> : vector<1xf32>
    %109 = vector.multi_reduction <add>, %108, %cst_38 [0] : vector<16x1xf32> to vector<1xf32>
    %110 = vector.shape_cast %109 : vector<1xf32> to vector<1x1xf32>
    %c1_i32_39 = arith.constant 1 : i32
    %111 = arith.maxsi %103, %c1_i32_39 : i32
    %112 = arith.sitofp %111 : i32 to f32
    %113 = vector.broadcast %112 : f32 to vector<1x1xf32>
    %114 = arith.divf %110, %113 : vector<1x1xf32>
    %115 = arith.addf %114, %27 : vector<1x1xf32>
    %c1 = arith.constant 1 : index
    %116 = memref.load %arg0[%c1] : memref<2xi32, #tpu.memory_space<smem>>
    %117 = vector.extract_strided_slice %101 {offsets = [16, 0], sizes = [16, 1], strides = [1, 1]} : vector<32x1xf32> to vector<16x1xf32>
    %118 = vector.broadcast %116 : i32 to vector<16x1xi32>
    %119 = arith.cmpi slt, %102, %118 : vector<16x1xi32>
    %cst_40 = arith.constant 0.000000e+00 : f32
    %120 = vector.broadcast %cst_40 : f32 to vector<16x1xf32>
    %121 = arith.select %119, %117, %120 : vector<16x1xi1>, vector<16x1xf32>
    %cst_41 = arith.constant dense<0.000000e+00> : vector<1xf32>
    %122 = vector.multi_reduction <add>, %121, %cst_41 [0] : vector<16x1xf32> to vector<1xf32>
    %123 = vector.shape_cast %122 : vector<1xf32> to vector<1x1xf32>
    %c1_i32_42 = arith.constant 1 : i32
    %124 = arith.maxsi %116, %c1_i32_42 : i32
    %125 = arith.sitofp %124 : i32 to f32
    %126 = vector.broadcast %125 : f32 to vector<1x1xf32>
    %127 = arith.divf %123, %126 : vector<1x1xf32>
    %128 = arith.addf %127, %27 : vector<1x1xf32>
    %129 = tpu.concatenate %115, %128 in 1 : vector<1x1xf32>, vector<1x1xf32> -> vector<1x2xf32>
    %c0_43 = arith.constant 0 : index
    %c0_44 = arith.constant 0 : index
    %130 = vector.load %arg4[%c0_43, %c0_44] : memref<1x2xf32, #tpu.memory_space<vmem>>, vector<1x2xf32>
    tpu.vector_store %arg4[%c0_43, %c0_44], %129 {strides = array<i32>} : memref<1x2xf32, #tpu.memory_space<vmem>>, vector<1x2xf32>,
    return
  }
}

</mosaic_0001>

<llo_original>
// kernel: tpu_custom_call.1
$region0: #{tpu_custom_call.1}
  #allocation0 [shape = 'u32[]', space=smem, size = 0x4, offset = 0x4, fixed_abs, tag = 'smem constant byte address 0x4 - core index']
  #allocation1 [shape = 'u32[144,128]{1,0:T(1,128)}', space=vmem, size = 0x12000, scoped, tag = 'internal scratch']
  %s0 = inlined_call_operand.vmem [shape: s32[2], index: 0, kind: input, shape index: {}]
  %s1 = inlined_call_operand.vmem [shape: f32[32,1], index: 1, kind: input, shape index: {}]
  %s2 = inlined_call_operand.vmem [shape: f32[192,32], index: 2, kind: input, shape index: {}]
  %s3 = inlined_call_operand.vmem [shape: f32[72,32], index: 3, kind: input, shape index: {}]
  %s4 = inlined_call_operand.hbm [shape: f32[1,2], index: 4, kind: output, shape index: {}]
  %s5 = sld [smem:[#allocation0]]
  $region30: #{tpu_custom_call.1} parent=0
    _
  %s7 = ssub.s32 1, %s5
  %s8 = scalar_select 0, %s7, %s5
  $region1: #{tpu_custom_call.1} parent=0
    #allocation2 [shape = 'u8[512]{0}', space=smem, size = 0x200, scoped, tag = 'input window, operand 0, single buffered']
    #allocation3 [shape = 's32[1]{0}', space=sflag, size = 0x4, scoped, tag = 'scoped memory for tpu_custom_call.1']
    #allocation4 [shape = 's32[1]{0}', space=sflag, size = 0x4, scoped, tag = 'scoped memory for tpu_custom_call.1']
    #allocation5 [shape = 'u8[512]{0}', space=vmem, size = 0x400, scoped, tag = 'output window, operand 0, single buffered']
    %9 = vsyncpa [#allocation4], 0
    %10 = vsyncpa [#allocation3], 0
    // Predicated region
    $region2: #{tpu_custom_call.1} parent=1 // pred_check
      _
    $region3: #{tpu_custom_call.1} parent=1 // pred_check_branch
      %12 = sbr.rel (0) target = $region5
    $region4: #{tpu_custom_call.1} parent=1 // pred_region
      %s14 = ssub.s32 16, 16
      %15 = vsyncadd [#allocation4], %s14
      %s17 = sshll.u32 %s0, 4
      %s18 = int_to_ptr.vmem [resolvable:$true] %s17
      %20 = dma.vmem_to_smem %s18, 16, [#allocation2], [#allocation4]
    $region5: #{tpu_custom_call.1} parent=1 // pred_fallthru
      _
    // Predicated region
    $region6: #{tpu_custom_call.1} parent=1 // pred_check
      _
    $region7: #{tpu_custom_call.1} parent=1 // pred_check_branch
      %22 = sbr.rel (0) target = $region9
    $region8: #{tpu_custom_call.1} parent=1 // pred_region
      _
    $region9: #{tpu_custom_call.1} parent=1 // pred_fallthru
      _
    // Predicated region
    $region10: #{tpu_custom_call.1} parent=1 // pred_check
      _
    $region11: #{tpu_custom_call.1} parent=1 // pred_check_branch
      %24 = sbr.rel (0) target = $region13
    $region12: #{tpu_custom_call.1} parent=1 // pred_region
      _
    $region13: #{tpu_custom_call.1} parent=1 // pred_fallthru
      _
    // Predicated region
    $region14: #{tpu_custom_call.1} parent=1 // pred_check
      _
    $region15: #{tpu_custom_call.1} parent=1 // pred_check_branch
      %26 = sbr.rel (0) target = $region17
    $region16: #{tpu_custom_call.1} parent=1 // pred_region
      _
    $region17: #{tpu_custom_call.1} parent=1 // pred_fallthru
      _
    // Predicated region
    $region18: #{tpu_custom_call.1} parent=1 // pred_check
      _
    $region19: #{tpu_custom_call.1} parent=1 // pred_check_branch
      %28 = sbr.rel (0) target = $region21
    $region20: #{tpu_custom_call.1} parent=1 // pred_region
      %29 = dma.done [#allocation4], 16
    $region21: #{tpu_custom_call.1} parent=1 // pred_fallthru
      _
    %30 = sfence
    %v31 = vlaneseq
    %v32 = vshrl.u32 %v31, 7
    %v33 = vadd.s32 %v32, 8
    %v34 = vadd.s32 %v32, 16
    %v35 = vadd.s32 %v32, 24
    %vm36 = vcmp.lt.s32.totalorder %v32, 0
    %v37 = vsub.s32 0, %v32
    %v38 = vsel %vm36, %v37, %v32
    %v39 = vshrl.u32 %v38, 4
    %v40 = vand.u32 %v38, 15
    %v41 = vsub.s32 0, %v40
    %v42 = vsel %vm36, %v41, %v40
    %vm43 = vcmp.lt.s32.totalorder %v33, 0
    %v44 = vsub.s32 0, %v33
    %v45 = vsel %vm43, %v44, %v33
    %v46 = vshrl.u32 %v45, 4
    %v47 = vand.u32 %v45, 15
    %v48 = vsub.s32 0, %v47
    %v49 = vsel %vm43, %v48, %v47
    %vm50 = vcmp.lt.s32.totalorder %v34, 0
    %v51 = vsub.s32 0, %v34
    %v52 = vsel %vm50, %v51, %v34
    %v53 = vshrl.u32 %v52, 4
    %v54 = vand.u32 %v52, 15
    %v55 = vsub.s32 0, %v54
    %v56 = vsel %vm50, %v55, %v54
    %vm57 = vcmp.lt.s32.totalorder %v35, 0
    %v58 = vsub.s32 0, %v35
    %v59 = vsel %vm57, %v58, %v35
    %v60 = vshrl.u32 %v59, 4
    %v61 = vand.u32 %v59, 15
    %v62 = vsub.s32 0, %v61
    %v63 = vsel %vm57, %v62, %v61
    %vm64 = vcmp.ne.s32.totalorder %v42, 0
    %vm65 = vcmp.ne.s32.totalorder %v49, 0
    %vm66 = vcmp.ne.s32.totalorder %v56, 0
    %vm67 = vcmp.ne.s32.totalorder %v63, 0
    %vm68 = vcmp.lt.s32.totalorder %v42, 0
    %vm69 = vcmp.lt.s32.totalorder %v49, 0
    %vm70 = vcmp.lt.s32.totalorder %v56, 0
    %vm71 = vcmp.lt.s32.totalorder %v63, 0
    %vm72 = vmand %vm68, %vm64
    %vm73 = vmand %vm69, %vm65
    %vm74 = vmand %vm70, %vm66
    %vm75 = vmand %vm71, %vm67
    %v76 = vadd.s32 %v42, 16
    %v77 = vadd.s32 %v49, 16
    %v78 = vadd.s32 %v56, 16
    %v79 = vadd.s32 %v63, 16
    %v80 = vsel %vm72, %v76, %v42
    %v81 = vsel %vm73, %v77, %v49
    %v82 = vsel %vm74, %v78, %v56
    %v83 = vsel %vm75, %v79, %v63
    %vm84 = vcmp.ne.s32.totalorder %v80, 0
    %vm85 = vcmp.ne.s32.totalorder %v81, 0
    %vm86 = vcmp.ne.s32.totalorder %v82, 0
    %vm87 = vcmp.ne.s32.totalorder %v83, 0
    %vm88 = vcmp.ne.s32.totalorder %v80, 15
    %vm89 = vcmp.ne.s32.totalorder %v81, 15
    %vm90 = vcmp.ne.s32.totalorder %v82, 15
    %vm91 = vcmp.ne.s32.totalorder %v83, 15
    %v92 = vld [vmem:[%s3] sm:$0xff]
    %v93 = vld [vmem:[%s1] sm:$0xff]
    %v94 = vld [vmem:[%s1 + $0x8] sm:$0xff]
    %v95 = vld [vmem:[%s1 + $0x10] sm:$0xff]
    %v96 = vld [vmem:[%s1 + $0x18] sm:$0xff]
    %98 = vset.pattern.permute.xlu0 0
    %99 = vperm.xlu0 %98, %v93
    %v100 = vpop.permute.xlu0 %99
    %103 = vset.pattern.permute.xlu0 0
    %104 = vperm.xlu0 %103, %v94
    %v105 = vpop.permute.xlu0 %104
    %108 = vset.pattern.permute.xlu0 0
    %109 = vperm.xlu0 %108, %v95
    %v110 = vpop.permute.xlu0 %109
    %113 = vset.pattern.permute.xlu0 0
    %114 = vperm.xlu0 %113, %v96
    %v115 = vpop.permute.xlu0 %114
    %v117 = vlaneseq
    %v118 = vshrl.u32 %v117, 7
    %v119 = vsub.s32 0, %v118
    %v120 = vrot.slane %v92, %v119
    %v121 = vmul.f32 %v100, %v120
    %v122 = vmul.f32 %v105, %v120
    %v123 = vmul.f32 %v110, %v120
    %v124 = vmul.f32 %v115, %v120
    %v125 = vrot.slane %v121, 7
    %v126 = vrot.slane %v122, 7
    %v127 = vrot.slane %v123, 7
    %v128 = vrot.slane %v124, 7
    %vm129 = vcmp.lt.s32.totalorder %v32, 1
    %v130 = vsel %vm129, %v127, %v128
    %v131 = vsel %vm129, %v126, %v127
    %v132 = vsel %vm129, %v125, %v126
    %v133 = vsel %vm129, %v128, %v125
    %v134 = vsel %vm84, 1, 0
    %v135 = vsel %vm85, 1, 0
    %v136 = vsel %vm86, 1, 0
    %v137 = vsel %vm87, 1, 0
    %vm138 = vcmp.eq.s32.totalorder %v134, 1
    %vm139 = vcmp.eq.s32.totalorder %v135, 1
    %vm140 = vcmp.eq.s32.totalorder %v136, 1
    %vm141 = vcmp.eq.s32.totalorder %v137, 1
    %v142 = vsel %vm138, %v133, 0.0
    %v143 = vsel %vm139, %v132, 0.0
    %v144 = vsel %vm140, %v131, 0.0
    %v145 = vsel %vm141, %v130, 0.0
    %v146 = vlaneseq
    %v147 = vshrl.u32 %v146, 7
    %v148 = vsub.s32 1, %v147
    %v149 = vrot.slane %v92, %v148
    %v150 = vmul.f32 %v100, %v149
    %v151 = vmul.f32 %v105, %v149
    %v152 = vmul.f32 %v110, %v149
    %v153 = vmul.f32 %v115, %v149
    %v154 = vadd.f32 %v142, %v150
    %v155 = vadd.f32 %v143, %v151
    %v156 = vadd.f32 %v144, %v152
    %v157 = vadd.f32 %v145, %v153
    %v158 = vlaneseq
    %v159 = vshrl.u32 %v158, 7
    %v160 = vsub.s32 2, %v159
    %v161 = vrot.slane %v92, %v160
    %v162 = vmul.f32 %v100, %v161
    %v163 = vmul.f32 %v105, %v161
    %v164 = vmul.f32 %v110, %v161
    %v165 = vmul.f32 %v115, %v161
    %v166 = vrot.slane %v162, 1
    %v167 = vrot.slane %v163, 1
    %v168 = vrot.slane %v164, 1
    %v169 = vrot.slane %v165, 1
    %vm170 = vcmp.lt.s32.totalorder %v32, 7
    %v171 = vsel %vm170, %v168, %v169
    %v172 = vsel %vm170, %v167, %v168
    %v173 = vsel %vm170, %v166, %v167
    %v174 = vsel %vm170, %v169, %v166
    %v175 = vsel %vm88, 1, 0
    %v176 = vsel %vm89, 1, 0
    %v177 = vsel %vm90, 1, 0
    %v178 = vsel %vm91, 1, 0
    %vm179 = vcmp.eq.s32.totalorder %v175, 1
    %vm180 = vcmp.eq.s32.totalorder %v176, 1
    %vm181 = vcmp.eq.s32.totalorder %v177, 1
    %vm182 = vcmp.eq.s32.totalorder %v178, 1
    %v183 = vsel %vm179, %v173, 0.0
    %v184 = vsel %vm180, %v172, 0.0
    %v185 = vsel %vm181, %v171, 0.0
    %v186 = vsel %vm182, %v174, 0.0
    %v187 = vadd.f32 %v154, %v183
    %v188 = vadd.f32 %v155, %v184
    %v189 = vadd.f32 %v156, %v185
    %v190 = vadd.f32 %v157, %v186
    %v191 = vlaneseq
    %v192 = vshrl.u32 %v191, 7
    %v193 = vsub.s32 3, %v192
    %v194 = vrot.slane %v92, %v193
    %v195 = vadd.f32 %v187, %v194
    %v196 = vadd.f32 %v188, %v194
    %v197 = vadd.f32 %v189, %v194
    %v198 = vadd.f32 %v190, %v194
    %v199 = vmax.f32 %v195, 0.0
    %v200 = vmax.f32 %v196, 0.0
    %v201 = vmax.f32 %v197, 0.0
    %v202 = vmax.f32 %v198, 0.0
    %v203 = vld [vmem:[%s3 + $0x8] sm:$0xff]
    %v204 = vld [vmem:[%s3 + $0x10] sm:$0xff]
    %v205 = vld [vmem:[%s3 + $0x18] sm:$0xff]
    %v206 = vld [vmem:[%s3 + $0x20] sm:$0xff]
    %v207 = vld [vmem:[%s3 + $0x28] sm:$0xff]
    %v208 = vld [vmem:[%s3 + $0x30] sm:$0xff]
    %v209 = vld [vmem:[%s3 + $0x38] sm:$0xff]
    %v210 = vld [vmem:[%s3 + $0x40] sm:$0xff]
    %v211 = vld [vmem:[%s2] sm:$0xff]
    %v212 = vld [vmem:[%s2 + $0x8] sm:$0xff]
    %v213 = vld [vmem:[%s2 + $0x10] sm:$0xff]
    %v214 = vld [vmem:[%s2 + $0x18] sm:$0xff]
    %v215 = vld [vmem:[%s2 + $0x20] sm:$0xff]
    %v216 = vld [vmem:[%s2 + $0x28] sm:$0xff]
    %v217 = vld [vmem:[%s2 + $0x30] sm:$0xff]
    %v218 = vld [vmem:[%s2 + $0x38] sm:$0xff]
    %v219 = vld [vmem:[%s2 + $0x40] sm:$0xff]
    %v220 = vld [vmem:[%s2 + $0x48] sm:$0xff]
    %v221 = vld [vmem:[%s2 + $0x50] sm:$0xff]
    %v222 = vld [vmem:[%s2 + $0x58] sm:$0xff]
    %v223 = vrot.slane %v199, 7
    %v224 = vrot.slane %v200, 7
    %v225 = vrot.slane %v201, 7
    %v226 = vrot.slane %v202, 7
    %v227 = vsel %vm129, %v225, %v226
    %v228 = vsel %vm129, %v224, %v225
    %v229 = vsel %vm129, %v223, %v224
    %v230 = vsel %vm129, %v226, %v223
    %v231 = vsel %vm138, %v230, 0.0
    %v232 = vsel %vm139, %v229, 0.0
    %v233 = vsel %vm140, %v228, 0.0
    %v234 = vsel %vm141, %v227, 0.0
    %vm235 = vcmask 261120
    %v237 = vsel %vm235, %v199, 0
    %v240 = vsel %vm235, %v200, 0
    %v243 = vsel %vm235, %v201, 0
    %v246 = vsel %vm235, %v202, 0
    %248 = vmatprep.subr.mxu0 0.0
    %249 = vmatpush1.msra.mxu0 0.0
    %250 = vmatprep.subr.mxu0 0.0
    %251 = vmatpush1.msra.mxu0 0.0
    %252 = vmatprep.subr.mxu0 0.0
    %253 = vmatpush1.msra.mxu0 0.0
    %254 = vmatprep.subr.mxu0 0.0
    %255 = vmatpush1.msra.mxu0 0.0
    %256 = vmatprep.subr.mxu0 0.0
    %257 = vmatpush1.msra.mxu0 0.0
    %258 = vmatprep.subr.mxu0 0.0
    %259 = vmatpush1.msra.mxu0 0.0
    %260 = vmatprep.subr.mxu0 0.0
    %261 = vmatpush1.msra.mxu0 0.0
    %262 = vmatprep.subr.mxu0 0.0
    %263 = vmatpush1.msra.mxu0 0.0
    %264 = vmatprep.subr.mxu0 0.0
    %265 = vmatpush1.msra.mxu0 0.0
    %266 = vmatprep.subr.mxu0 0.0
    %267 = vmatpush1.msra.mxu0 0.0
    %268 = vmatprep.subr.mxu0 0.0
    %269 = vmatpush1.msra.mxu0 0.0
    %270 = vmatprep.subr.mxu0 0.0
    %271 = vmatpush1.msra.mxu0 0.0
    %272 = vmatprep.subr.mxu0 0.0
    %273 = vmatpush1.msra.mxu0 %v218
    %274 = vmatprep.subr.mxu0 0.0
    %275 = vmatpush1.msra.mxu0 %v217
    %276 = vmatprep.subr.mxu0 0.0
    %277 = vmatpush1.msra.mxu0 %v216
    %278 = vmatprep.subr.mxu0 0.0
    %279 = vmatpush1.msra.mxu0 %v215
    %280 = vmatprep.subr.mxu0 0.0
    %281 = vmatpush2.msra.mxu0 0.0
    %282 = vmatprep.subr.mxu0 0.0
    %283 = vmatpush2.msra.mxu0 0.0
    %284 = vmatprep.subr.mxu0 0.0
    %285 = vmatpush2.msra.mxu0 0.0
    %286 = vmatprep.subr.mxu0 0.0
    %287 = vmatpush2.msra.mxu0 0.0
    %288 = vmatprep.subr.mxu0 0.0
    %289 = vmatpush2.msra.mxu0 0.0
    %290 = vmatprep.subr.mxu0 0.0
    %291 = vmatpush2.msra.mxu0 0.0
    %292 = vmatprep.subr.mxu0 0.0
    %293 = vmatpush2.msra.mxu0 0.0
    %294 = vmatprep.subr.mxu0 0.0
    %295 = vmatpush2.msra.mxu0 0.0
    %296 = vmatprep.subr.mxu0 0.0
    %297 = vmatpush2.msra.mxu0 0.0
    %298 = vmatprep.subr.mxu0 0.0
    %299 = vmatpush2.msra.mxu0 0.0
    %300 = vmatprep.subr.mxu0 0.0
    %301 = vmatpush2.msra.mxu0 0.0
    %302 = vmatprep.subr.mxu0 0.0
    %303 = vmatpush2.msra.mxu0 0.0
    %304 = vmatprep.subr.mxu0 0.0
    %305 = vmatpush2.msra.mxu0 0.0
    %306 = vmatprep.subr.mxu0 0.0
    %307 = vmatpush2.msra.mxu0 0.0
    %308 = vmatprep.subr.mxu0 0.0
    %309 = vmatpush2.msra.mxu0 0.0
    %310 = vmatprep.subr.mxu0 0.0
    %311 = vmatpush2.msra.mxu0 0.0
    %312 = vmatprep.mubr.f32.mxu0 0.0
    %313 = vmatmul.mubr.f32.gmra.mxu0 %v237
    %v314 = vpop.f32.mrf.mxu0
    %v315 = vadd.f32 0.0, %v314
    %v316 = vpop.f32.mrf.mxu0
    %317 = vmatprep.mubr.f32.mxu0 0.0
    %318 = vmatmul.mubr.f32.gmra.mxu0 %v240
    %v319 = vpop.f32.mrf.mxu0
    %v320 = vadd.f32 0.0, %v319
    %v321 = vpop.f32.mrf.mxu0
    %322 = vmatprep.mubr.f32.mxu0 0.0
    %323 = vmatmul.mubr.f32.gmra.mxu0 %v243
    %v324 = vpop.f32.mrf.mxu0
    %v325 = vadd.f32 0.0, %v324
    %v326 = vpop.f32.mrf.mxu0
    %327 = vmatprep.mubr.f32.mxu0 0.0
    %328 = vmatmul.mubr.f32.gmra.mxu0 %v246
    %v329 = vpop.f32.mrf.mxu0
    %v330 = vadd.f32 0.0, %v329
    %v331 = vpop.f32.mrf.mxu0
    %332 = vdwg.mxu0
    %v334 = vsel %vm235, %v231, 0
    %v337 = vsel %vm235, %v232, 0
    %v340 = vsel %vm235, %v233, 0
    %v343 = vsel %vm235, %v234, 0
    %345 = vmatprep.subr.mxu0 0.0
    %346 = vmatpush1.msra.mxu0 0.0
    %347 = vmatprep.subr.mxu0 0.0
    %348 = vmatpush1.msra.mxu0 0.0
    %349 = vmatprep.subr.mxu0 0.0
    %350 = vmatpush1.msra.mxu0 0.0
    %351 = vmatprep.subr.mxu0 0.0
    %352 = vmatpush1.msra.mxu0 0.0
    %353 = vmatprep.subr.mxu0 0.0
    %354 = vmatpush1.msra.mxu0 0.0
    %355 = vmatprep.subr.mxu0 0.0
    %356 = vmatpush1.msra.mxu0 0.0
    %357 = vmatprep.subr.mxu0 0.0
    %358 = vmatpush1.msra.mxu0 0.0
    %359 = vmatprep.subr.mxu0 0.0
    %360 = vmatpush1.msra.mxu0 0.0
    %361 = vmatprep.subr.mxu0 0.0
    %362 = vmatpush1.msra.mxu0 0.0
    %363 = vmatprep.subr.mxu0 0.0
    %364 = vmatpush1.msra.mxu0 0.0
    %365 = vmatprep.subr.mxu0 0.0
    %366 = vmatpush1.msra.mxu0 0.0
    %367 = vmatprep.subr.mxu0 0.0
    %368 = vmatpush1.msra.mxu0 0.0
    %369 = vmatprep.subr.mxu0 0.0
    %370 = vmatpush1.msra.mxu0 %v214
    %371 = vmatprep.subr.mxu0 0.0
    %372 = vmatpush1.msra.mxu0 %v213
    %373 = vmatprep.subr.mxu0 0.0
    %374 = vmatpush1.msra.mxu0 %v212
    %375 = vmatprep.subr.mxu0 0.0
    %376 = vmatpush1.msra.mxu0 %v211
    %377 = vmatprep.subr.mxu0 0.0
    %378 = vmatpush2.msra.mxu0 0.0
    %379 = vmatprep.subr.mxu0 0.0
    %380 = vmatpush2.msra.mxu0 0.0
    %381 = vmatprep.subr.mxu0 0.0
    %382 = vmatpush2.msra.mxu0 0.0
    %383 = vmatprep.subr.mxu0 0.0
    %384 = vmatpush2.msra.mxu0 0.0
    %385 = vmatprep.subr.mxu0 0.0
    %386 = vmatpush2.msra.mxu0 0.0
    %387 = vmatprep.subr.mxu0 0.0
    %388 = vmatpush2.msra.mxu0 0.0
    %389 = vmatprep.subr.mxu0 0.0
    %390 = vmatpush2.msra.mxu0 0.0
    %391 = vmatprep.subr.mxu0 0.0
    %392 = vmatpush2.msra.mxu0 0.0
    %393 = vmatprep.subr.mxu0 0.0
    %394 = vmatpush2.msra.mxu0 0.0
    %395 = vmatprep.subr.mxu0 0.0
    %396 = vmatpush2.msra.mxu0 0.0
    %397 = vmatprep.subr.mxu0 0.0
    %398 = vmatpush2.msra.mxu0 0.0
    %399 = vmatprep.subr.mxu0 0.0
    %400 = vmatpush2.msra.mxu0 0.0
    %401 = vmatprep.subr.mxu0 0.0
    %402 = vmatpush2.msra.mxu0 0.0
    %403 = vmatprep.subr.mxu0 0.0
    %404 = vmatpush2.msra.mxu0 0.0
    %405 = vmatprep.subr.mxu0 0.0
    %406 = vmatpush2.msra.mxu0 0.0
    %407 = vmatprep.subr.mxu0 0.0
    %408 = vmatpush2.msra.mxu0 0.0
    %409 = vmatprep.mubr.f32.mxu0 0.0
    %410 = vmatmul.mubr.f32.gmra.mxu0 %v334
    %v411 = vpop.f32.mrf.mxu0
    %v412 = vadd.f32 %v315, %v411
    %v413 = vpop.f32.mrf.mxu0
    %414 = vmatprep.mubr.f32.mxu0 0.0
    %415 = vmatmul.mubr.f32.gmra.mxu0 %v337
    %v416 = vpop.f32.mrf.mxu0
    %v417 = vadd.f32 %v320, %v416
    %v418 = vpop.f32.mrf.mxu0
    %419 = vmatprep.mubr.f32.mxu0 0.0
    %420 = vmatmul.mubr.f32.gmra.mxu0 %v340
    %v421 = vpop.f32.mrf.mxu0
    %v422 = vadd.f32 %v325, %v421
    %v423 = vpop.f32.mrf.mxu0
    %424 = vmatprep.mubr.f32.mxu0 0.0
    %425 = vmatmul.mubr.f32.gmra.mxu0 %v343
    %v426 = vpop.f32.mrf.mxu0
    %v427 = vadd.f32 %v330, %v426
    %v428 = vpop.f32.mrf.mxu0
    %429 = vdwg.mxu0
    %v430 = vrot.slane %v199, 1
    %v431 = vrot.slane %v200, 1
    %v432 = vrot.slane %v201, 1
    %v433 = vrot.slane %v202, 1
    %v434 = vsel %vm170, %v432, %v433
    %v435 = vsel %vm170, %v431, %v432
    %v436 = vsel %vm170, %v430, %v431
    %v437 = vsel %vm170, %v433, %v430
    %v438 = vsel %vm179, %v436, 0.0
    %v439 = vsel %vm180, %v435, 0.0
    %v440 = vsel %vm181, %v434, 0.0
    %v441 = vsel %vm182, %v437, 0.0
    %v443 = vsel %vm235, %v438, 0
    %v446 = vsel %vm235, %v439, 0
    %v449 = vsel %vm235, %v440, 0
    %v452 = vsel %vm235, %v441, 0
    %454 = vmatprep.subr.mxu0 0.0
    %455 = vmatpush1.msra.mxu0 0.0
    %456 = vmatprep.subr.mxu0 0.0
    %457 = vmatpush1.msra.mxu0 0.0
    %458 = vmatprep.subr.mxu0 0.0
    %459 = vmatpush1.msra.mxu0 0.0
    %460 = vmatprep.subr.mxu0 0.0
    %461 = vmatpush1.msra.mxu0 0.0
    %462 = vmatprep.subr.mxu0 0.0
    %463 = vmatpush1.msra.mxu0 0.0
    %464 = vmatprep.subr.mxu0 0.0
    %465 = vmatpush1.msra.mxu0 0.0
    %466 = vmatprep.subr.mxu0 0.0
    %467 = vmatpush1.msra.mxu0 0.0
    %468 = vmatprep.subr.mxu0 0.0
    %469 = vmatpush1.msra.mxu0 0.0
    %470 = vmatprep.subr.mxu0 0.0
    %471 = vmatpush1.msra.mxu0 0.0
    %472 = vmatprep.subr.mxu0 0.0
    %473 = vmatpush1.msra.mxu0 0.0
    %474 = vmatprep.subr.mxu0 0.0
    %475 = vmatpush1.msra.mxu0 0.0
    %476 = vmatprep.subr.mxu0 0.0
    %477 = vmatpush1.msra.mxu0 0.0
    %478 = vmatprep.subr.mxu0 0.0
    %479 = vmatpush1.msra.mxu0 %v222
    %480 = vmatprep.subr.mxu0 0.0
    %481 = vmatpush1.msra.mxu0 %v221
    %482 = vmatprep.subr.mxu0 0.0
    %483 = vmatpush1.msra.mxu0 %v220
    %484 = vmatprep.subr.mxu0 0.0
    %485 = vmatpush1.msra.mxu0 %v219
    %486 = vmatprep.subr.mxu0 0.0
    %487 = vmatpush2.msra.mxu0 0.0
    %488 = vmatprep.subr.mxu0 0.0
    %489 = vmatpush2.msra.mxu0 0.0
    %490 = vmatprep.subr.mxu0 0.0
    %491 = vmatpush2.msra.mxu0 0.0
    %492 = vmatprep.subr.mxu0 0.0
    %493 = vmatpush2.msra.mxu0 0.0
    %494 = vmatprep.subr.mxu0 0.0
    %495 = vmatpush2.msra.mxu0 0.0
    %496 = vmatprep.subr.mxu0 0.0
    %497 = vmatpush2.msra.mxu0 0.0
    %498 = vmatprep.subr.mxu0 0.0
    %499 = vmatpush2.msra.mxu0 0.0
    %500 = vmatprep.subr.mxu0 0.0
    %501 = vmatpush2.msra.mxu0 0.0
    %502 = vmatprep.subr.mxu0 0.0
    %503 = vmatpush2.msra.mxu0 0.0
    %504 = vmatprep.subr.mxu0 0.0
    %505 = vmatpush2.msra.mxu0 0.0
    %506 = vmatprep.subr.mxu0 0.0
    %507 = vmatpush2.msra.mxu0 0.0
    %508 = vmatprep.subr.mxu0 0.0
    %509 = vmatpush2.msra.mxu0 0.0
    %510 = vmatprep.subr.mxu0 0.0
    %511 = vmatpush2.msra.mxu0 0.0
    %512 = vmatprep.subr.mxu0 0.0
    %513 = vmatpush2.msra.mxu0 0.0
    %514 = vmatprep.subr.mxu0 0.0
    %515 = vmatpush2.msra.mxu0 0.0
    %516 = vmatprep.subr.mxu0 0.0
    %517 = vmatpush2.msra.mxu0 0.0
    %518 = vmatprep.mubr.f32.mxu0 0.0
    %519 = vmatmul.mubr.f32.gmra.mxu0 %v443
    %v520 = vpop.f32.mrf.mxu0
    %v521 = vadd.f32 0.0, %v520
    %v522 = vpop.f32.mrf.mxu0
    %523 = vmatprep.mubr.f32.mxu0 0.0
    %524 = vmatmul.mubr.f32.gmra.mxu0 %v446
    %v525 = vpop.f32.mrf.mxu0
    %v526 = vadd.f32 0.0, %v525
    %v527 = vpop.f32.mrf.mxu0
    %528 = vmatprep.mubr.f32.mxu0 0.0
    %529 = vmatmul.mubr.f32.gmra.mxu0 %v449
    %v530 = vpop.f32.mrf.mxu0
    %v531 = vadd.f32 0.0, %v530
    %v532 = vpop.f32.mrf.mxu0
    %533 = vmatprep.mubr.f32.mxu0 0.0
    %534 = vmatmul.mubr.f32.gmra.mxu0 %v452
    %v535 = vpop.f32.mrf.mxu0
    %v536 = vadd.f32 0.0, %v535
    %v537 = vpop.f32.mrf.mxu0
    %538 = vdwg.mxu0
    %v539 = vadd.f32 %v412, %v521
    %v540 = vadd.f32 %v417, %v526
    %v541 = vadd.f32 %v422, %v531
    %v542 = vadd.f32 %v427, %v536
    %v543 = vadd.f32 %v539, %v203
    %v544 = vadd.f32 %v540, %v204
    %v545 = vadd.f32 %v541, %v205
    %v546 = vadd.f32 %v542, %v206
    %v547 = vmax.f32 %v543, 0.0
    %v548 = vmax.f32 %v544, 0.0
    %v549 = vmax.f32 %v545, 0.0
    %v550 = vmax.f32 %v546, 0.0
    %v551 = vld [vmem:[%s2 + $0x60] sm:$0xff]
    %v552 = vld [vmem:[%s2 + $0x68] sm:$0xff]
    %v553 = vld [vmem:[%s2 + $0x70] sm:$0xff]
    %v554 = vld [vmem:[%s2 + $0x78] sm:$0xff]
    %v555 = vld [vmem:[%s2 + $0x80] sm:$0xff]
    %v556 = vld [vmem:[%s2 + $0x88] sm:$0xff]
    %v557 = vld [vmem:[%s2 + $0x90] sm:$0xff]
    %v558 = vld [vmem:[%s2 + $0x98] sm:$0xff]
    %v559 = vld [vmem:[%s2 + $0xa0] sm:$0xff]
    %v560 = vld [vmem:[%s2 + $0xa8] sm:$0xff]
    %v561 = vld [vmem:[%s2 + $0xb0] sm:$0xff]
    %v562 = vld [vmem:[%s2 + $0xb8] sm:$0xff]
    %v563 = vrot.slane %v547, 7
    %v564 = vrot.slane %v548, 7
    %v565 = vrot.slane %v549, 7
    %v566 = vrot.slane %v550, 7
    %v567 = vsel %vm129, %v565, %v566
    %v568 = vsel %vm129, %v564, %v565
    %v569 = vsel %vm129, %v563, %v564
    %v570 = vsel %vm129, %v566, %v563
    %v571 = vsel %vm138, %v570, 0.0
    %v572 = vsel %vm139, %v569, 0.0
    %v573 = vsel %vm140, %v568, 0.0
    %v574 = vsel %vm141, %v567, 0.0
    %v576 = vsel %vm235, %v547, 0
    %v579 = vsel %vm235, %v548, 0
    %v582 = vsel %vm235, %v549, 0
    %v585 = vsel %vm235, %v550, 0
    %587 = vmatprep.subr.mxu0 0.0
    %588 = vmatpush1.msra.mxu0 0.0
    %589 = vmatprep.subr.mxu0 0.0
    %590 = vmatpush1.msra.mxu0 0.0
    %591 = vmatprep.subr.mxu0 0.0
    %592 = vmatpush1.msra.mxu0 0.0
    %593 = vmatprep.subr.mxu0 0.0
    %594 = vmatpush1.msra.mxu0 0.0
    %595 = vmatprep.subr.mxu0 0.0
    %596 = vmatpush1.msra.mxu0 0.0
    %597 = vmatprep.subr.mxu0 0.0
    %598 = vmatpush1.msra.mxu0 0.0
    %599 = vmatprep.subr.mxu0 0.0
    %600 = vmatpush1.msra.mxu0 0.0
    %601 = vmatprep.subr.mxu0 0.0
    %602 = vmatpush1.msra.mxu0 0.0
    %603 = vmatprep.subr.mxu0 0.0
    %604 = vmatpush1.msra.mxu0 0.0
    %605 = vmatprep.subr.mxu0 0.0
    %606 = vmatpush1.msra.mxu0 0.0
    %607 = vmatprep.subr.mxu0 0.0
    %608 = vmatpush1.msra.mxu0 0.0
    %609 = vmatprep.subr.mxu0 0.0
    %610 = vmatpush1.msra.mxu0 0.0
    %611 = vmatprep.subr.mxu0 0.0
    %612 = vmatpush1.msra.mxu0 %v558
    %613 = vmatprep.subr.mxu0 0.0
    %614 = vmatpush1.msra.mxu0 %v557
    %615 = vmatprep.subr.mxu0 0.0
    %616 = vmatpush1.msra.mxu0 %v556
    %617 = vmatprep.subr.mxu0 0.0
    %618 = vmatpush1.msra.mxu0 %v555
    %619 = vmatprep.subr.mxu0 0.0
    %620 = vmatpush2.msra.mxu0 0.0
    %621 = vmatprep.subr.mxu0 0.0
    %622 = vmatpush2.msra.mxu0 0.0
    %623 = vmatprep.subr.mxu0 0.0
    %624 = vmatpush2.msra.mxu0 0.0
    %625 = vmatprep.subr.mxu0 0.0
    %626 = vmatpush2.msra.mxu0 0.0
    %627 = vmatprep.subr.mxu0 0.0
    %628 = vmatpush2.msra.mxu0 0.0
    %629 = vmatprep.subr.mxu0 0.0
    %630 = vmatpush2.msra.mxu0 0.0
    %631 = vmatprep.subr.mxu0 0.0
    %632 = vmatpush2.msra.mxu0 0.0
    %633 = vmatprep.subr.mxu0 0.0
    %634 = vmatpush2.msra.mxu0 0.0
    %635 = vmatprep.subr.mxu0 0.0
    %636 = vmatpush2.msra.mxu0 0.0
    %637 = vmatprep.subr.mxu0 0.0
    %638 = vmatpush2.msra.mxu0 0.0
    %639 = vmatprep.subr.mxu0 0.0
    %640 = vmatpush2.msra.mxu0 0.0
    %641 = vmatprep.subr.mxu0 0.0
    %642 = vmatpush2.msra.mxu0 0.0
    %643 = vmatprep.subr.mxu0 0.0
    %644 = vmatpush2.msra.mxu0 0.0
    %645 = vmatprep.subr.mxu0 0.0
    %646 = vmatpush2.msra.mxu0 0.0
    %647 = vmatprep.subr.mxu0 0.0
    %648 = vmatpush2.msra.mxu0 0.0
    %649 = vmatprep.subr.mxu0 0.0
    %650 = vmatpush2.msra.mxu0 0.0
    %651 = vmatprep.mubr.f32.mxu0 0.0
    %652 = vmatmul.mubr.f32.gmra.mxu0 %v576
    %v653 = vpop.f32.mrf.mxu0
    %v654 = vadd.f32 0.0, %v653
    %v655 = vpop.f32.mrf.mxu0
    %656 = vmatprep.mubr.f32.mxu0 0.0
    %657 = vmatmul.mubr.f32.gmra.mxu0 %v579
    %v658 = vpop.f32.mrf.mxu0
    %v659 = vadd.f32 0.0, %v658
    %v660 = vpop.f32.mrf.mxu0
    %661 = vmatprep.mubr.f32.mxu0 0.0
    %662 = vmatmul.mubr.f32.gmra.mxu0 %v582
    %v663 = vpop.f32.mrf.mxu0
    %v664 = vadd.f32 0.0, %v663
    %v665 = vpop.f32.mrf.mxu0
    %666 = vmatprep.mubr.f32.mxu0 0.0
    %667 = vmatmul.mubr.f32.gmra.mxu0 %v585
    %v668 = vpop.f32.mrf.mxu0
    %v669 = vadd.f32 0.0, %v668
    %v670 = vpop.f32.mrf.mxu0
    %671 = vdwg.mxu0
    %v673 = vsel %vm235, %v571, 0
    %v676 = vsel %vm235, %v572, 0
    %v679 = vsel %vm235, %v573, 0
    %v682 = vsel %vm235, %v574, 0
    %684 = vmatprep.subr.mxu0 0.0
    %685 = vmatpush1.msra.mxu0 0.0
    %686 = vmatprep.subr.mxu0 0.0
    %687 = vmatpush1.msra.mxu0 0.0
    %688 = vmatprep.subr.mxu0 0.0
    %689 = vmatpush1.msra.mxu0 0.0
    %690 = vmatprep.subr.mxu0 0.0
    %691 = vmatpush1.msra.mxu0 0.0
    %692 = vmatprep.subr.mxu0 0.0
    %693 = vmatpush1.msra.mxu0 0.0
    %694 = vmatprep.subr.mxu0 0.0
    %695 = vmatpush1.msra.mxu0 0.0
    %696 = vmatprep.subr.mxu0 0.0
    %697 = vmatpush1.msra.mxu0 0.0
    %698 = vmatprep.subr.mxu0 0.0
    %699 = vmatpush1.msra.mxu0 0.0
    %700 = vmatprep.subr.mxu0 0.0
    %701 = vmatpush1.msra.mxu0 0.0
    %702 = vmatprep.subr.mxu0 0.0
    %703 = vmatpush1.msra.mxu0 0.0
    %704 = vmatprep.subr.mxu0 0.0
    %705 = vmatpush1.msra.mxu0 0.0
    %706 = vmatprep.subr.mxu0 0.0
    %707 = vmatpush1.msra.mxu0 0.0
    %708 = vmatprep.subr.mxu0 0.0
    %709 = vmatpush1.msra.mxu0 %v554
    %710 = vmatprep.subr.mxu0 0.0
    %711 = vmatpush1.msra.mxu0 %v553
    %712 = vmatprep.subr.mxu0 0.0
    %713 = vmatpush1.msra.mxu0 %v552
    %714 = vmatprep.subr.mxu0 0.0
    %715 = vmatpush1.msra.mxu0 %v551
    %716 = vmatprep.subr.mxu0 0.0
    %717 = vmatpush2.msra.mxu0 0.0
    %718 = vmatprep.subr.mxu0 0.0
    %719 = vmatpush2.msra.mxu0 0.0
    %720 = vmatprep.subr.mxu0 0.0
    %721 = vmatpush2.msra.mxu0 0.0
    %722 = vmatprep.subr.mxu0 0.0
    %723 = vmatpush2.msra.mxu0 0.0
    %724 = vmatprep.subr.mxu0 0.0
    %725 = vmatpush2.msra.mxu0 0.0
    %726 = vmatprep.subr.mxu0 0.0
    %727 = vmatpush2.msra.mxu0 0.0
    %728 = vmatprep.subr.mxu0 0.0
    %729 = vmatpush2.msra.mxu0 0.0
    %730 = vmatprep.subr.mxu0 0.0
    %731 = vmatpush2.msra.mxu0 0.0
    %732 = vmatprep.subr.mxu0 0.0
    %733 = vmatpush2.msra.mxu0 0.0
    %734 = vmatprep.subr.mxu0 0.0
    %735 = vmatpush2.msra.mxu0 0.0
    %736 = vmatprep.subr.mxu0 0.0
    %737 = vmatpush2.msra.mxu0 0.0
    %738 = vmatprep.subr.mxu0 0.0
    %739 = vmatpush2.msra.mxu0 0.0
    %740 = vmatprep.subr.mxu0 0.0
    %741 = vmatpush2.msra.mxu0 0.0
    %742 = vmatprep.subr.mxu0 0.0
    %743 = vmatpush2.msra.mxu0 0.0
    %744 = vmatprep.subr.mxu0 0.0
    %745 = vmatpush2.msra.mxu0 0.0
    %746 = vmatprep.subr.mxu0 0.0
    %747 = vmatpush2.msra.mxu0 0.0
    %748 = vmatprep.mubr.f32.mxu0 0.0
    %749 = vmatmul.mubr.f32.gmra.mxu0 %v673
    %v750 = vpop.f32.mrf.mxu0
    %v751 = vadd.f32 %v654, %v750
    %v752 = vpop.f32.mrf.mxu0
    %753 = vmatprep.mubr.f32.mxu0 0.0
    %754 = vmatmul.mubr.f32.gmra.mxu0 %v676
    %v755 = vpop.f32.mrf.mxu0
    %v756 = vadd.f32 %v659, %v755
    %v757 = vpop.f32.mrf.mxu0
    %758 = vmatprep.mubr.f32.mxu0 0.0
    %759 = vmatmul.mubr.f32.gmra.mxu0 %v679
    %v760 = vpop.f32.mrf.mxu0
    %v761 = vadd.f32 %v664, %v760
    %v762 = vpop.f32.mrf.mxu0
    %763 = vmatprep.mubr.f32.mxu0 0.0
    %764 = vmatmul.mubr.f32.gmra.mxu0 %v682
    %v765 = vpop.f32.mrf.mxu0
    %v766 = vadd.f32 %v669, %v765
    %v767 = vpop.f32.mrf.mxu0
    %768 = vdwg.mxu0
    %v769 = vrot.slane %v547, 1
    %v770 = vrot.slane %v548, 1
    %v771 = vrot.slane %v549, 1
    %v772 = vrot.slane %v550, 1
    %v773 = vsel %vm170, %v771, %v772
    %v774 = vsel %vm170, %v770, %v771
    %v775 = vsel %vm170, %v769, %v770
    %v776 = vsel %vm170, %v772, %v769
    %v777 = vsel %vm179, %v775, 0.0
    %v778 = vsel %vm180, %v774, 0.0
    %v779 = vsel %vm181, %v773, 0.0
    %v780 = vsel %vm182, %v776, 0.0
    %v782 = vsel %vm235, %v777, 0
    %v785 = vsel %vm235, %v778, 0
    %v788 = vsel %vm235, %v779, 0
    %v791 = vsel %vm235, %v780, 0
    %793 = vmatprep.subr.mxu0 0.0
    %794 = vmatpush1.msra.mxu0 0.0
    %795 = vmatprep.subr.mxu0 0.0
    %796 = vmatpush1.msra.mxu0 0.0
    %797 = vmatprep.subr.mxu0 0.0
    %798 = vmatpush1.msra.mxu0 0.0
    %799 = vmatprep.subr.mxu0 0.0
    %800 = vmatpush1.msra.mxu0 0.0
    %801 = vmatprep.subr.mxu0 0.0
    %802 = vmatpush1.msra.mxu0 0.0
    %803 = vmatprep.subr.mxu0 0.0
    %804 = vmatpush1.msra.mxu0 0.0
    %805 = vmatprep.subr.mxu0 0.0
    %806 = vmatpush1.msra.mxu0 0.0
    %807 = vmatprep.subr.mxu0 0.0
    %808 = vmatpush1.msra.mxu0 0.0
    %809 = vmatprep.subr.mxu0 0.0
    %810 = vmatpush1.msra.mxu0 0.0
    %811 = vmatprep.subr.mxu0 0.0
    %812 = vmatpush1.msra.mxu0 0.0
    %813 = vmatprep.subr.mxu0 0.0
    %814 = vmatpush1.msra.mxu0 0.0
    %815 = vmatprep.subr.mxu0 0.0
    %816 = vmatpush1.msra.mxu0 0.0
    %817 = vmatprep.subr.mxu0 0.0
    %818 = vmatpush1.msra.mxu0 %v562
    %819 = vmatprep.subr.mxu0 0.0
    %820 = vmatpush1.msra.mxu0 %v561
    %821 = vmatprep.subr.mxu0 0.0
    %822 = vmatpush1.msra.mxu0 %v560
    %823 = vmatprep.subr.mxu0 0.0
    %824 = vmatpush1.msra.mxu0 %v559
    %825 = vmatprep.subr.mxu0 0.0
    %826 = vmatpush2.msra.mxu0 0.0
    %827 = vmatprep.subr.mxu0 0.0
    %828 = vmatpush2.msra.mxu0 0.0
    %829 = vmatprep.subr.mxu0 0.0
    %830 = vmatpush2.msra.mxu0 0.0
    %831 = vmatprep.subr.mxu0 0.0
    %832 = vmatpush2.msra.mxu0 0.0
    %833 = vmatprep.subr.mxu0 0.0
    %834 = vmatpush2.msra.mxu0 0.0
    %835 = vmatprep.subr.mxu0 0.0
    %836 = vmatpush2.msra.mxu0 0.0
    %837 = vmatprep.subr.mxu0 0.0
    %838 = vmatpush2.msra.mxu0 0.0
    %839 = vmatprep.subr.mxu0 0.0
    %840 = vmatpush2.msra.mxu0 0.0
    %841 = vmatprep.subr.mxu0 0.0
    %842 = vmatpush2.msra.mxu0 0.0
    %843 = vmatprep.subr.mxu0 0.0
    %844 = vmatpush2.msra.mxu0 0.0
    %845 = vmatprep.subr.mxu0 0.0
    %846 = vmatpush2.msra.mxu0 0.0
    %847 = vmatprep.subr.mxu0 0.0
    %848 = vmatpush2.msra.mxu0 0.0
    %849 = vmatprep.subr.mxu0 0.0
    %850 = vmatpush2.msra.mxu0 0.0
    %851 = vmatprep.subr.mxu0 0.0
    %852 = vmatpush2.msra.mxu0 0.0
    %853 = vmatprep.subr.mxu0 0.0
    %854 = vmatpush2.msra.mxu0 0.0
    %855 = vmatprep.subr.mxu0 0.0
    %856 = vmatpush2.msra.mxu0 0.0
    %857 = vmatprep.mubr.f32.mxu0 0.0
    %858 = vmatmul.mubr.f32.gmra.mxu0 %v782
    %v859 = vpop.f32.mrf.mxu0
    %v860 = vadd.f32 0.0, %v859
    %v861 = vpop.f32.mrf.mxu0
    %862 = vmatprep.mubr.f32.mxu0 0.0
    %863 = vmatmul.mubr.f32.gmra.mxu0 %v785
    %v864 = vpop.f32.mrf.mxu0
    %v865 = vadd.f32 0.0, %v864
    %v866 = vpop.f32.mrf.mxu0
    %867 = vmatprep.mubr.f32.mxu0 0.0
    %868 = vmatmul.mubr.f32.gmra.mxu0 %v788
    %v869 = vpop.f32.mrf.mxu0
    %v870 = vadd.f32 0.0, %v869
    %v871 = vpop.f32.mrf.mxu0
    %872 = vmatprep.mubr.f32.mxu0 0.0
    %873 = vmatmul.mubr.f32.gmra.mxu0 %v791
    %v874 = vpop.f32.mrf.mxu0
    %v875 = vadd.f32 0.0, %v874
    %v876 = vpop.f32.mrf.mxu0
    %877 = vdwg.mxu0
    %v878 = vadd.f32 %v751, %v860
    %v879 = vadd.f32 %v756, %v865
    %v880 = vadd.f32 %v761, %v870
    %v881 = vadd.f32 %v766, %v875
    %v882 = vadd.f32 %v878, %v207
    %v883 = vadd.f32 %v879, %v208
    %v884 = vadd.f32 %v880, %v209
    %v885 = vadd.f32 %v881, %v210
    %v886 = vmax.f32 %v882, 0.0
    %v887 = vmax.f32 %v883, 0.0
    %v888 = vmax.f32 %v884, 0.0
    %v889 = vmax.f32 %v885, 0.0
    %v890 = vlaneseq
    %v891 = vshrl.u32 %v890, 7
    %v892 = vsub.s32 4, %v891
    %v893 = vrot.slane %v92, %v892
    %v894 = vmul.f32 %v886, %v893
    %v895 = vmul.f32 %v887, %v893
    %v896 = vmul.f32 %v888, %v893
    %v897 = vmul.f32 %v889, %v893
    %v898 = vsel %vm235, %v894, 0.0
    %899 = vadd.xlane.f32.xlu0 %v898
    %v900 = vpop.xlane.xlu0 %899
    %v901 = vsel %vm235, %v895, 0.0
    %902 = vadd.xlane.f32.xlu0 %v901
    %v903 = vpop.xlane.xlu0 %902
    %v904 = vsel %vm235, %v896, 0.0
    %905 = vadd.xlane.f32.xlu0 %v904
    %v906 = vpop.xlane.xlu0 %905
    %v907 = vsel %vm235, %v897, 0.0
    %908 = vadd.xlane.f32.xlu0 %v907
    %v909 = vpop.xlane.xlu0 %908
    %s910 = sld [smem:[#allocation2]]
    %v911 = vstv %s910
    %vm912 = vcmp.lt.s32.totalorder %v32, %v911
    %vm913 = vcmp.lt.s32.totalorder %v33, %v911
    %v914 = vsel %vm912, %v900, 0.0
    %v915 = vsel %vm913, %v903, 0.0
    %v916 = vadd.f32 %v914, %v915
    %v917 = vrot.slane %v916, 4
    %v918 = vadd.f32 %v916, %v917
    %v919 = vrot.slane %v918, 2
    %v920 = vadd.f32 %v918, %v919
    %v921 = vrot.slane %v920, 1
    %v922 = vadd.f32 %v920, %v921
    %p923 = scmp.gt.s32.totalorder %s910, 1
    %s924 = scalar_select %p923, %s910, 1
    %s925 = scvt.s32.f32 %s924
    %v926 = vstv %s925
    %v927 = vrcp.pop %v926
    %v928 = vmul.f32 %v922, %v927
    %v929 = vadd.f32 %v928, %v92
    %s930 = sld [smem:[#allocation2 + $0x1]]
    %v931 = vstv %s930
    %vm932 = vcmp.lt.s32.totalorder %v32, %v931
    %vm933 = vcmp.lt.s32.totalorder %v33, %v931
    %v934 = vsel %vm932, %v906, 0.0
    %v935 = vsel %vm933, %v909, 0.0
    %v936 = vadd.f32 %v934, %v935
    %v937 = vrot.slane %v936, 4
    %v938 = vadd.f32 %v936, %v937
    %v939 = vrot.slane %v938, 2
    %v940 = vadd.f32 %v938, %v939
    %v941 = vrot.slane %v940, 1
    %v942 = vadd.f32 %v940, %v941
    %p943 = scmp.gt.s32.totalorder %s930, 1
    %s944 = scalar_select %p943, %s930, 1
    %s945 = scvt.s32.f32 %s944
    %v946 = vstv %s945
    %v947 = vrcp.pop %v946
    %v948 = vmul.f32 %v942, %v947
    %v949 = vadd.f32 %v948, %v92
    %951 = vrot.lane.b32.xlu0 %v949, 1
    %v952 = vpop.permute.xlu0 %951
    %vm954 = vcmask 7168
    %v955 = vsel %vm954, %v929, %v952
    %vm956 = vcmask 13317
    %957 = vst.msk [vmem:[#allocation5 - $0x5] sm:$0x20] %vm956, %v955
    // Predicated region
    $region22: #{tpu_custom_call.1} parent=1 // pred_check
      _
    $region23: #{tpu_custom_call.1} parent=1 // pred_check_branch
      %959 = sbr.rel (0) target = $region25
    $region24: #{tpu_custom_call.1} parent=1 // pred_region
      %s961 = ssub.s32 16, 16
      %962 = vsyncadd [#allocation3], %s961
      %s964 = sshll.u32 [#allocation5], 4
      %s965 = int_to_ptr.vmem [resolvable:$true] %s964
      %967 = dma.vmem_to_hbm [thread:$0]  %s965, 16, %s4, [#allocation3]
    $region25: #{tpu_custom_call.1} parent=1 // pred_fallthru
      _
    // Predicated region
    $region26: #{tpu_custom_call.1} parent=1 // pred_check
      _
    $region27: #{tpu_custom_call.1} parent=1 // pred_check_branch
      %969 = sbr.rel (0) target = $region29
    $region28: #{tpu_custom_call.1} parent=1 // pred_region
      %970 = dma.done [#allocation3], 16
    $region29: #{tpu_custom_call.1} parent=1 // pred_fallthru
      _
    %971 = vsyncpa [#allocation3], 1
    %972 = vsyncpa [#allocation4], 1

</llo_original>
